<compile_context>
chip_gen: v7x
topology: tpu7x:2x2x1
jax: 0.10.0
libtpu: 0.0.40
codegen_flags: <defaults>
</compile_context>

<pallas_src>
import functools
import math

import numpy as np
import jax
import jax.numpy as jnp
from jax.experimental import pallas as pl
from jax.experimental.pallas import tpu as pltpu

# Output-bounding constants (from the PyTorch module)
MIN_TAU0 = 25.0
MAX_TAU0 = 30.0
MIN_LOGKSV = math.log(0.01)
MAX_LOGKSV = math.log(100.0)
MIN_LOGKS = math.log(0.01)
MAX_LOGKS = math.log(100.0)


def _round_up(n, m):
    return ((n + m - 1) // m) * m


def _choose_tiling(batch, tile_b_max):
    """Pick a lane-aligned batch tile.

    - Balanced tiles (minimal zero-padding for ragged B).
    - Once the batch spans >= 2 lane groups, force >= 2 grid steps so the
      ("parallel",) batch axis actually shards over v7x's 2 TensorCores.
    Returns (tile_b, num_tiles) with tile_b a multiple of 128.
    """
    n128 = _round_up(max(batch, 1), 128) // 128          # 128-lane groups
    max_groups = max(tile_b_max // 128, 1)
    if n128 >= 2:
        max_groups = min(max_groups, pl.cdiv(n128, 2))   # >= 2 steps (v7x)
    num_tiles = pl.cdiv(n128, max_groups)
    groups = pl.cdiv(n128, num_tiles)                    # balanced tile size
    num_tiles = pl.cdiv(n128, groups)
    return groups * 128, num_tiles


def _msv_kernel(x_ref,
                w1_ref, b1_ref,
                w2_ref, b2_ref,
                w3_ref, b3_ref,
                w4_ref, b4_ref,
                w5_ref, b5_ref,
                min_ref, scale_ref, pass_ref,
                out_ref, *, compute_dtype):
    # x_ref: (in_dim, TILE_B).  Weights in PyTorch (out, in) layout, already
    # pre-cast to compute_dtype in the wrapper; biases are (out, 1) f32.
    x = x_ref[...].astype(compute_dtype)                 # no-op when f32

    def dense(h, w_ref, b_ref):
        # MXU matmul with f32 accumulation; bias broadcast over batch lanes.
        return jnp.dot(w_ref[...], h, preferred_element_type=jnp.float32) + b_ref[...]

    # All layers on the (otherwise idle) MXU; ReLU on the VPU.
    h = jnp.maximum(dense(x, w1_ref, b1_ref), 0.0)                      # (128, TILE_B)
    h = jnp.maximum(dense(h.astype(compute_dtype), w2_ref, b2_ref), 0.0)  # (64, TILE_B)
    h = jnp.maximum(dense(h.astype(compute_dtype), w3_ref, b3_ref), 0.0)  # (32, TILE_B)
    h = jnp.maximum(dense(h.astype(compute_dtype), w4_ref, b4_ref), 0.0)  # (16, TILE_B)
    out = dense(h.astype(compute_dtype), w5_ref, b5_ref)                  # (4,  TILE_B)

    # Fused bounded-output epilogue:
    #   rows 0..2 : min + (max - min) * sigmoid(out)    (scale != 0, pass == 0)
    #   row  3    : passthrough                         (min = scale = 0, pass == 1)
    # Sigmoid runs on the EUP (its own VLIW slot), so row 3's wasted sigmoid is free.
    out_ref[...] = (min_ref[...] + scale_ref[...] * jax.nn.sigmoid(out)
                    + pass_ref[...] * out)


def msv_forward(x, params, *, tile_b_max=2048, compute_dtype=jnp.float32,
                transposed_input=False, transposed_output=False):
    """Forward pass of ModifiedSternVolmerMLP.

    x: (B, input_dim) f32, or (input_dim, B) if transposed_input=True.
    params: list of (W, b) with W (out, in) and b (out, 1) (PyTorch Linear layout).
    Returns (B, 4), or (4, B) if transposed_output=True (lets the consumer skip
    the wrapper-side output transpose entirely).
    """
    if transposed_input:
        in_dim, B = x.shape
        x_t = x.astype(jnp.float32)
    else:
        B, in_dim = x.shape
        x_t = x.astype(jnp.float32).T                    # (in_dim, B): batch on lanes

    tile_b, num_tiles = _choose_tiling(B, tile_b_max)
    bp = tile_b * num_tiles
    if bp != B:
        x_t = jnp.pad(x_t, ((0, 0), (0, bp - B)))

    # Pre-cast weights once in the wrapper (removes per-step casts of the
    # VMEM-resident weight tiles); biases stay f32 (added to f32 accumulator).
    params_c = [(w.astype(compute_dtype), b.astype(jnp.float32)) for w, b in params]

    mins = jnp.array([[MIN_TAU0], [MIN_LOGKSV], [MIN_LOGKS], [0.0]], jnp.float32)
    scales = jnp.array([[MAX_TAU0 - MIN_TAU0],
                        [MAX_LOGKSV - MIN_LOGKSV],
                        [MAX_LOGKS - MIN_LOGKS],
                        [0.0]], jnp.float32)
    passm = jnp.array([[0.0], [0.0], [0.0], [1.0]], jnp.float32)

    def resident(shape):
        # Full-array block, same block index every step -> VMEM-resident, DMA'd once.
        return pl.BlockSpec(shape, lambda i: (0, 0))

    flat_args = [x_t]
    in_specs = [pl.BlockSpec((in_dim, tile_b), lambda i: (0, i))]
    for w, b in params_c:
        flat_args += [w, b]
        in_specs += [resident(w.shape), resident(b.shape)]
    flat_args += [mins, scales, passm]
    in_specs += [resident((4, 1))] * 3

    # Advisory cost estimate so XLA schedules the call against surrounding ops.
    dims = [in_dim] + [w.shape[0] for w, _ in params]
    flops_per_col = 2 * sum(dims[i] * dims[i + 1] for i in range(len(dims) - 1))
    weight_bytes = sum(w.size * w.dtype.itemsize + b.size * b.dtype.itemsize
                       for w, b in params_c)
    cost = pl.CostEstimate(
        flops=flops_per_col * bp,
        transcendentals=4 * bp,
        bytes_accessed=(in_dim * 4 + 4 * 4) * bp + weight_bytes,
    )

    out_t = pl.pallas_call(
        functools.partial(_msv_kernel, compute_dtype=compute_dtype),
        out_shape=jax.ShapeDtypeStruct((4, bp), jnp.float32),
        grid=(num_tiles,),
        in_specs=in_specs,
        out_specs=pl.BlockSpec((4, tile_b), lambda i: (0, i)),
        compiler_params=pltpu.CompilerParams(
            dimension_semantics=("parallel",)),          # shard batch over TCs (v7x)
        cost_estimate=cost,
    )(*flat_args)

    out_t = out_t[:, :B]
    return out_t if transposed_output else out_t.T       # (4, B) or (B, 4)


def init_params(key, input_dim=2):
    """Deterministic init mimicking PyTorch Linear default U[-1/sqrt(fan_in), +].
    Weights in PyTorch (out, in) layout; biases as (out, 1)."""
    dims = [input_dim, 128, 64, 32, 16, 4]
    params = []
    for i in range(len(dims) - 1):
        fan_in, fan_out = dims[i], dims[i + 1]
        key, kw, kb = jax.random.split(key, 3)
        bound = 1.0 / math.sqrt(fan_in)
        w = jax.random.uniform(kw, (fan_out, fan_in), jnp.float32, -bound, bound)
        b = jax.random.uniform(kb, (fan_out, 1), jnp.float32, -bound, bound)
        params.append((w, b))
    return params


def msv_forward_ref(x, params):
    """Pure-JAX reference of the PyTorch forward, for verification."""
    h = x
    for i, (w, b) in enumerate(params):
        h = h @ w.T + b.T
        if i < len(params) - 1:
            h = jnp.maximum(h, 0.0)
    out = h
    tau0 = MIN_TAU0 + (MAX_TAU0 - MIN_TAU0) * jax.nn.sigmoid(out[:, 0])
    logksv = MIN_LOGKSV + (MAX_LOGKSV - MIN_LOGKSV) * jax.nn.sigmoid(out[:, 1])
    logks = MIN_LOGKS + (MAX_LOGKS - MIN_LOGKS) * jax.nn.sigmoid(out[:, 2])
    return jnp.stack([tau0, logksv, logks, out[:, 3]], axis=1)


if __name__ == "__main__":
    key = jax.random.PRNGKey(0)
    key, kx = jax.random.split(key)

    B, INPUT_DIM = 8, 2
    x = jax.random.normal(kx, (B, INPUT_DIM), dtype=jnp.float32)
    params = init_params(key, input_dim=INPUT_DIM)

    ref = jax.block_until_ready(msv_forward_ref(x, params))

    # Exact (f32 MXU) path — preserves the PyTorch module's numerics.
    out = jax.block_until_ready(msv_forward(x, params))
    np.testing.assert_allclose(np.asarray(out), np.asarray(ref), rtol=1e-4, atol=1e-4)

    # bf16 MXU fast path (f32 accumulation) — checked loosely by design.
    out_bf16 = jax.block_until_ready(
        msv_forward(x, params, compute_dtype=jnp.bfloat16))
    np.testing.assert_allclose(np.asarray(out_bf16), np.asarray(ref),
                               rtol=1e-1, atol=1e-1)

    # Ragged batch exercising the multi-step grid (balanced tiles, >=2 steps)
    # and the transposed-output path (no wrapper-side output transpose).
    key, kx2 = jax.random.split(key)
    B2 = 300
    x2 = jax.random.normal(kx2, (B2, INPUT_DIM), dtype=jnp.float32)
    ref2 = jax.block_until_ready(msv_forward_ref(x2, params))
    out2 = jax.block_until_ready(
        msv_forward(x2, params, transposed_output=True))
    np.testing.assert_allclose(np.asarray(out2), np.asarray(ref2.T),
                               rtol=1e-4, atol=1e-4)

    print("KERNEL_OK")
</pallas_src>

<mosaic_0001>
module attributes {stable_mosaic.version = 11 : i64} {
  func.func @_msv_kernel(%arg0: i32, %arg1: memref<2x128xf32, #tpu.memory_space<vmem>>, %arg2: memref<128x2xf32, #tpu.memory_space<vmem>>, %arg3: memref<128x1xf32, #tpu.memory_space<vmem>>, %arg4: memref<64x128xf32, #tpu.memory_space<vmem>>, %arg5: memref<64x1xf32, #tpu.memory_space<vmem>>, %arg6: memref<32x64xf32, #tpu.memory_space<vmem>>, %arg7: memref<32x1xf32, #tpu.memory_space<vmem>>, %arg8: memref<16x32xf32, #tpu.memory_space<vmem>>, %arg9: memref<16x1xf32, #tpu.memory_space<vmem>>, %arg10: memref<4x16xf32, #tpu.memory_space<vmem>>, %arg11: memref<4x1xf32, #tpu.memory_space<vmem>>, %arg12: memref<4x1xf32, #tpu.memory_space<vmem>>, %arg13: memref<4x1xf32, #tpu.memory_space<vmem>>, %arg14: memref<4x1xf32, #tpu.memory_space<vmem>>, %arg15: memref<4x128xf32, #tpu.memory_space<vmem>>) attributes {dimension_semantics = [#tpu.dimension_semantics<parallel>], iteration_bounds = array<i64: 1>, scalar_prefetch = 0 : i64, scratch_operands = 0 : i64, tpu.core_type = #tpu.core_type<tc>, window_params = [{transform_indices = @transform_0, window_bounds = array<i64: 2, 128>}, {pipeline_mode = #tpu.pipeline_mode<synchronous>, transform_indices = @transform_1, window_bounds = array<i64: 128, 2>}, {pipeline_mode = #tpu.pipeline_mode<synchronous>, transform_indices = @transform_2, window_bounds = array<i64: 128, 1>}, {pipeline_mode = #tpu.pipeline_mode<synchronous>, transform_indices = @transform_3, window_bounds = array<i64: 64, 128>}, {pipeline_mode = #tpu.pipeline_mode<synchronous>, transform_indices = @transform_4, window_bounds = array<i64: 64, 1>}, {pipeline_mode = #tpu.pipeline_mode<synchronous>, transform_indices = @transform_5, window_bounds = array<i64: 32, 64>}, {pipeline_mode = #tpu.pipeline_mode<synchronous>, transform_indices = @transform_6, window_bounds = array<i64: 32, 1>}, {pipeline_mode = #tpu.pipeline_mode<synchronous>, transform_indices = @transform_7, window_bounds = array<i64: 16, 32>}, {pipeline_mode = #tpu.pipeline_mode<synchronous>, transform_indices = @transform_8, window_bounds = array<i64: 16, 1>}, {pipeline_mode = #tpu.pipeline_mode<synchronous>, transform_indices = @transform_9, window_bounds = array<i64: 4, 16>}, {pipeline_mode = #tpu.pipeline_mode<synchronous>, transform_indices = @transform_10, window_bounds = array<i64: 4, 1>}, {pipeline_mode = #tpu.pipeline_mode<synchronous>, transform_indices = @transform_11, window_bounds = array<i64: 4, 1>}, {pipeline_mode = #tpu.pipeline_mode<synchronous>, transform_indices = @transform_12, window_bounds = array<i64: 4, 1>}, {pipeline_mode = #tpu.pipeline_mode<synchronous>, transform_indices = @transform_13, window_bounds = array<i64: 4, 1>}, {transform_indices = @transform_14, window_bounds = array<i64: 4, 128>}]} {
    %c0 = arith.constant 0 : index
    %c0_0 = arith.constant 0 : index
    %0 = vector.load %arg1[%c0, %c0_0] : memref<2x128xf32, #tpu.memory_space<vmem>>, vector<2x128xf32>
    %c0_1 = arith.constant 0 : index
    %c0_2 = arith.constant 0 : index
    %1 = vector.load %arg2[%c0_1, %c0_2] : memref<128x2xf32, #tpu.memory_space<vmem>>, vector<128x2xf32>
    %cst = arith.constant dense<0.000000e+00> : vector<128x128xf32>
    %2 = tpu.matmul %1, %0, %cst {dimension_numbers = #tpu.dot_dimension_numbers<[1], [0], [0], [1], [0, 0, 1, 1], [], []>} : vector<128x2xf32>, vector<2x128xf32>, vector<128x128xf32> -> vector<128x128xf32>
    %c0_3 = arith.constant 0 : index
    %c0_4 = arith.constant 0 : index
    %3 = vector.load %arg3[%c0_3, %c0_4] : memref<128x1xf32, #tpu.memory_space<vmem>>, vector<128x1xf32>
    %4 = vector.broadcast %3 : vector<128x1xf32> to vector<128x128xf32>
    %5 = arith.addf %2, %4 : vector<128x128xf32>
    %cst_5 = arith.constant 0.000000e+00 : f32
    %6 = vector.broadcast %cst_5 : f32 to vector<128x128xf32>
    %7 = arith.maximumf %5, %6 : vector<128x128xf32>
    %c0_6 = arith.constant 0 : index
    %c0_7 = arith.constant 0 : index
    %8 = vector.load %arg4[%c0_6, %c0_7] : memref<64x128xf32, #tpu.memory_space<vmem>>, vector<64x128xf32>
    %cst_8 = arith.constant dense<0.000000e+00> : vector<64x128xf32>
    %9 = tpu.matmul %8, %7, %cst_8 {dimension_numbers = #tpu.dot_dimension_numbers<[1], [0], [0], [1], [0, 0, 1, 1], [], []>} : vector<64x128xf32>, vector<128x128xf32>, vector<64x128xf32> -> vector<64x128xf32>
    %c0_9 = arith.constant 0 : index
    %c0_10 = arith.constant 0 : index
    %10 = vector.load %arg5[%c0_9, %c0_10] : memref<64x1xf32, #tpu.memory_space<vmem>>, vector<64x1xf32>
    %11 = vector.broadcast %10 : vector<64x1xf32> to vector<64x128xf32>
    %12 = arith.addf %9, %11 : vector<64x128xf32>
    %cst_11 = arith.constant 0.000000e+00 : f32
    %13 = vector.broadcast %cst_11 : f32 to vector<64x128xf32>
    %14 = arith.maximumf %12, %13 : vector<64x128xf32>
    %c0_12 = arith.constant 0 : index
    %c0_13 = arith.constant 0 : index
    %15 = vector.load %arg6[%c0_12, %c0_13] : memref<32x64xf32, #tpu.memory_space<vmem>>, vector<32x64xf32>
    %cst_14 = arith.constant dense<0.000000e+00> : vector<32x128xf32>
    %16 = tpu.matmul %15, %14, %cst_14 {dimension_numbers = #tpu.dot_dimension_numbers<[1], [0], [0], [1], [0, 0, 1, 1], [], []>} : vector<32x64xf32>, vector<64x128xf32>, vector<32x128xf32> -> vector<32x128xf32>
    %c0_15 = arith.constant 0 : index
    %c0_16 = arith.constant 0 : index
    %17 = vector.load %arg7[%c0_15, %c0_16] : memref<32x1xf32, #tpu.memory_space<vmem>>, vector<32x1xf32>
    %18 = vector.broadcast %17 : vector<32x1xf32> to vector<32x128xf32>
    %19 = arith.addf %16, %18 : vector<32x128xf32>
    %cst_17 = arith.constant 0.000000e+00 : f32
    %20 = vector.broadcast %cst_17 : f32 to vector<32x128xf32>
    %21 = arith.maximumf %19, %20 : vector<32x128xf32>
    %c0_18 = arith.constant 0 : index
    %c0_19 = arith.constant 0 : index
    %22 = vector.load %arg8[%c0_18, %c0_19] : memref<16x32xf32, #tpu.memory_space<vmem>>, vector<16x32xf32>
    %cst_20 = arith.constant dense<0.000000e+00> : vector<16x128xf32>
    %23 = tpu.matmul %22, %21, %cst_20 {dimension_numbers = #tpu.dot_dimension_numbers<[1], [0], [0], [1], [0, 0, 1, 1], [], []>} : vector<16x32xf32>, vector<32x128xf32>, vector<16x128xf32> -> vector<16x128xf32>
    %c0_21 = arith.constant 0 : index
    %c0_22 = arith.constant 0 : index
    %24 = vector.load %arg9[%c0_21, %c0_22] : memref<16x1xf32, #tpu.memory_space<vmem>>, vector<16x1xf32>
    %25 = vector.broadcast %24 : vector<16x1xf32> to vector<16x128xf32>
    %26 = arith.addf %23, %25 : vector<16x128xf32>
    %cst_23 = arith.constant 0.000000e+00 : f32
    %27 = vector.broadcast %cst_23 : f32 to vector<16x128xf32>
    %28 = arith.maximumf %26, %27 : vector<16x128xf32>
    %c0_24 = arith.constant 0 : index
    %c0_25 = arith.constant 0 : index
    %29 = vector.load %arg10[%c0_24, %c0_25] : memref<4x16xf32, #tpu.memory_space<vmem>>, vector<4x16xf32>
    %cst_26 = arith.constant dense<0.000000e+00> : vector<4x128xf32>
    %30 = tpu.matmul %29, %28, %cst_26 {dimension_numbers = #tpu.dot_dimension_numbers<[1], [0], [0], [1], [0, 0, 1, 1], [], []>} : vector<4x16xf32>, vector<16x128xf32>, vector<4x128xf32> -> vector<4x128xf32>
    %c0_27 = arith.constant 0 : index
    %c0_28 = arith.constant 0 : index
    %31 = vector.load %arg11[%c0_27, %c0_28] : memref<4x1xf32, #tpu.memory_space<vmem>>, vector<4x1xf32>
    %32 = vector.broadcast %31 : vector<4x1xf32> to vector<4x128xf32>
    %33 = arith.addf %30, %32 : vector<4x128xf32>
    %c0_29 = arith.constant 0 : index
    %c0_30 = arith.constant 0 : index
    %34 = vector.load %arg12[%c0_29, %c0_30] : memref<4x1xf32, #tpu.memory_space<vmem>>, vector<4x1xf32>
    %c0_31 = arith.constant 0 : index
    %c0_32 = arith.constant 0 : index
    %35 = vector.load %arg13[%c0_31, %c0_32] : memref<4x1xf32, #tpu.memory_space<vmem>>, vector<4x1xf32>
    %36 = arith.negf %33 : vector<4x128xf32>
    %37 = math.exp %36 : vector<4x128xf32>
    %cst_33 = arith.constant 1.000000e+00 : f32
    %38 = vector.broadcast %cst_33 : f32 to vector<4x128xf32>
    %39 = arith.addf %38, %37 : vector<4x128xf32>
    %40 = arith.divf %38, %39 : vector<4x128xf32>
    %41 = vector.broadcast %35 : vector<4x1xf32> to vector<4x128xf32>
    %42 = arith.mulf %41, %40 : vector<4x128xf32>
    %43 = vector.broadcast %34 : vector<4x1xf32> to vector<4x128xf32>
    %44 = arith.addf %43, %42 : vector<4x128xf32>
    %c0_34 = arith.constant 0 : index
    %c0_35 = arith.constant 0 : index
    %45 = vector.load %arg14[%c0_34, %c0_35] : memref<4x1xf32, #tpu.memory_space<vmem>>, vector<4x1xf32>
    %46 = vector.broadcast %45 : vector<4x1xf32> to vector<4x128xf32>
    %47 = arith.mulf %46, %33 : vector<4x128xf32>
    %48 = arith.addf %44, %47 : vector<4x128xf32>
    %c0_36 = arith.constant 0 : index
    %c0_37 = arith.constant 0 : index
    %49 = vector.load %arg15[%c0_36, %c0_37] : memref<4x128xf32, #tpu.memory_space<vmem>>, vector<4x128xf32>
    tpu.vector_store %arg15[%c0_36, %c0_37], %48 {strides = array<i32>} : memref<4x128xf32, #tpu.memory_space<vmem>>, vector<4x128xf32>,
    return
  }
  func.func @transform_0(%arg0: i32) -> (i32, i32) {
    %c0_i32 = arith.constant 0 : i32
    %c0_i32_0 = arith.constant 0 : i32
    return %c0_i32, %arg0 : i32, i32
  }
  func.func @transform_1(%arg0: i32) -> (i32, i32) {
    %c0_i32 = arith.constant 0 : i32
    %c0_i32_0 = arith.constant 0 : i32
    %c0_i32_1 = arith.constant 0 : i32
    return %c0_i32, %c0_i32_0 : i32, i32
  }
  func.func @transform_2(%arg0: i32) -> (i32, i32) {
    %c0_i32 = arith.constant 0 : i32
    %c0_i32_0 = arith.constant 0 : i32
    %c0_i32_1 = arith.constant 0 : i32
    return %c0_i32, %c0_i32_0 : i32, i32
  }
  func.func @transform_3(%arg0: i32) -> (i32, i32) {
    %c0_i32 = arith.constant 0 : i32
    %c0_i32_0 = arith.constant 0 : i32
    %c0_i32_1 = arith.constant 0 : i32
    return %c0_i32, %c0_i32_0 : i32, i32
  }
  func.func @transform_4(%arg0: i32) -> (i32, i32) {
    %c0_i32 = arith.constant 0 : i32
    %c0_i32_0 = arith.constant 0 : i32
    %c0_i32_1 = arith.constant 0 : i32
    return %c0_i32, %c0_i32_0 : i32, i32
  }
  func.func @transform_5(%arg0: i32) -> (i32, i32) {
    %c0_i32 = arith.constant 0 : i32
    %c0_i32_0 = arith.constant 0 : i32
    %c0_i32_1 = arith.constant 0 : i32
    return %c0_i32, %c0_i32_0 : i32, i32
  }
  func.func @transform_6(%arg0: i32) -> (i32, i32) {
    %c0_i32 = arith.constant 0 : i32
    %c0_i32_0 = arith.constant 0 : i32
    %c0_i32_1 = arith.constant 0 : i32
    return %c0_i32, %c0_i32_0 : i32, i32
  }
  func.func @transform_7(%arg0: i32) -> (i32, i32) {
    %c0_i32 = arith.constant 0 : i32
    %c0_i32_0 = arith.constant 0 : i32
    %c0_i32_1 = arith.constant 0 : i32
    return %c0_i32, %c0_i32_0 : i32, i32
  }
  func.func @transform_8(%arg0: i32) -> (i32, i32) {
    %c0_i32 = arith.constant 0 : i32
    %c0_i32_0 = arith.constant 0 : i32
    %c0_i32_1 = arith.constant 0 : i32
    return %c0_i32, %c0_i32_0 : i32, i32
  }
  func.func @transform_9(%arg0: i32) -> (i32, i32) {
    %c0_i32 = arith.constant 0 : i32
    %c0_i32_0 = arith.constant 0 : i32
    %c0_i32_1 = arith.constant 0 : i32
    return %c0_i32, %c0_i32_0 : i32, i32
  }
  func.func @transform_10(%arg0: i32) -> (i32, i32) {
    %c0_i32 = arith.constant 0 : i32
    %c0_i32_0 = arith.constant 0 : i32
    %c0_i32_1 = arith.constant 0 : i32
    return %c0_i32, %c0_i32_0 : i32, i32
  }
  func.func @transform_11(%arg0: i32) -> (i32, i32) {
    %c0_i32 = arith.constant 0 : i32
    %c0_i32_0 = arith.constant 0 : i32
    %c0_i32_1 = arith.constant 0 : i32
    return %c0_i32, %c0_i32_0 : i32, i32
  }
  func.func @transform_12(%arg0: i32) -> (i32, i32) {
    %c0_i32 = arith.constant 0 : i32
    %c0_i32_0 = arith.constant 0 : i32
    %c0_i32_1 = arith.constant 0 : i32
    return %c0_i32, %c0_i32_0 : i32, i32
  }
  func.func @transform_13(%arg0: i32) -> (i32, i32) {
    %c0_i32 = arith.constant 0 : i32
    %c0_i32_0 = arith.constant 0 : i32
    %c0_i32_1 = arith.constant 0 : i32
    return %c0_i32, %c0_i32_0 : i32, i32
  }
  func.func @transform_14(%arg0: i32) -> (i32, i32) {
    %c0_i32 = arith.constant 0 : i32
    %c0_i32_0 = arith.constant 0 : i32
    return %c0_i32, %arg0 : i32, i32
  }
}

</mosaic_0001>

<llo_original>
// kernel: tpu_custom_call.1
$region0: #{tpu_custom_call.1}
  #allocation0 [shape = 'u32[]', space=smem, size = 0x4, offset = 0x4, fixed_abs, tag = 'smem constant byte address 0x4 - core index']
  #allocation1 [shape = 'u32[144,128]{1,0:T(1,128)}', space=vmem, size = 0x12000, scoped, tag = 'internal scratch']
  %s0 = inlined_call_operand.vmem [shape: f32[2,128], index: 0, kind: input, shape index: {}]
  %s1 = inlined_call_operand.vmem [shape: f32[128,2], index: 1, kind: input, shape index: {}]
  %s2 = inlined_call_operand.vmem [shape: f32[128,1], index: 2, kind: input, shape index: {}]
  %s3 = inlined_call_operand.vmem [shape: f32[64,128], index: 3, kind: input, shape index: {}]
  %s4 = inlined_call_operand.vmem [shape: f32[64,1], index: 4, kind: input, shape index: {}]
  %s5 = inlined_call_operand.vmem [shape: f32[32,64], index: 5, kind: input, shape index: {}]
  %s6 = inlined_call_operand.vmem [shape: f32[32,1], index: 6, kind: input, shape index: {}]
  %s7 = inlined_call_operand.vmem [shape: f32[16,32], index: 7, kind: input, shape index: {}]
  %s8 = inlined_call_operand.vmem [shape: f32[16,1], index: 8, kind: input, shape index: {}]
  %s9 = inlined_call_operand.vmem [shape: f32[4,16], index: 9, kind: input, shape index: {}]
  %s10 = inlined_call_operand.vmem [shape: f32[4,1], index: 10, kind: input, shape index: {}]
  %s11 = inlined_call_operand.vmem [shape: f32[4,1], index: 11, kind: input, shape index: {}]
  %s12 = inlined_call_operand.vmem [shape: f32[4,1], index: 12, kind: input, shape index: {}]
  %s13 = inlined_call_operand.vmem [shape: f32[4,1], index: 13, kind: input, shape index: {}]
  %s14 = inlined_call_operand.hbm [shape: f32[4,128], index: 14, kind: output, shape index: {}]
  %s15 = sld [smem:[#allocation0]]
  $region66: #{tpu_custom_call.1} parent=0
    _
  %s17 = ssub.s32 1, %s15
  %s18 = scalar_select 0, %s17, %s15
  $region1: #{tpu_custom_call.1} parent=0
    #allocation2 [shape = 'u8[2048]{0}', space=vmem, size = 0x800, scoped, tag = 'output window, operand 0, single buffered']
    #allocation3 [shape = 's32[1]{0}', space=sflag, size = 0x4, scoped, tag = 'scoped memory for tpu_custom_call.1']
    %19 = vsyncpa [#allocation3], 0
    // Predicated region
    $region2: #{tpu_custom_call.1} parent=1 // pred_check
      _
    $region3: #{tpu_custom_call.1} parent=1 // pred_check_branch
      %21 = sbr.rel (0) target = $region5
    $region4: #{tpu_custom_call.1} parent=1 // pred_region
      _
    $region5: #{tpu_custom_call.1} parent=1 // pred_fallthru
      _
    // Predicated region
    $region6: #{tpu_custom_call.1} parent=1 // pred_check
      _
    $region7: #{tpu_custom_call.1} parent=1 // pred_check_branch
      %23 = sbr.rel (0) target = $region9
    $region8: #{tpu_custom_call.1} parent=1 // pred_region
      _
    $region9: #{tpu_custom_call.1} parent=1 // pred_fallthru
      _
    // Predicated region
    $region10: #{tpu_custom_call.1} parent=1 // pred_check
      _
    $region11: #{tpu_custom_call.1} parent=1 // pred_check_branch
      %25 = sbr.rel (0) target = $region13
    $region12: #{tpu_custom_call.1} parent=1 // pred_region
      _
    $region13: #{tpu_custom_call.1} parent=1 // pred_fallthru
      _
    // Predicated region
    $region14: #{tpu_custom_call.1} parent=1 // pred_check
      _
    $region15: #{tpu_custom_call.1} parent=1 // pred_check_branch
      %27 = sbr.rel (0) target = $region17
    $region16: #{tpu_custom_call.1} parent=1 // pred_region
      _
    $region17: #{tpu_custom_call.1} parent=1 // pred_fallthru
      _
    // Predicated region
    $region18: #{tpu_custom_call.1} parent=1 // pred_check
      _
    $region19: #{tpu_custom_call.1} parent=1 // pred_check_branch
      %29 = sbr.rel (0) target = $region21
    $region20: #{tpu_custom_call.1} parent=1 // pred_region
      _
    $region21: #{tpu_custom_call.1} parent=1 // pred_fallthru
      _
    // Predicated region
    $region22: #{tpu_custom_call.1} parent=1 // pred_check
      _
    $region23: #{tpu_custom_call.1} parent=1 // pred_check_branch
      %31 = sbr.rel (0) target = $region25
    $region24: #{tpu_custom_call.1} parent=1 // pred_region
      _
    $region25: #{tpu_custom_call.1} parent=1 // pred_fallthru
      _
    // Predicated region
    $region26: #{tpu_custom_call.1} parent=1 // pred_check
      _
    $region27: #{tpu_custom_call.1} parent=1 // pred_check_branch
      %33 = sbr.rel (0) target = $region29
    $region28: #{tpu_custom_call.1} parent=1 // pred_region
      _
    $region29: #{tpu_custom_call.1} parent=1 // pred_fallthru
      _
    // Predicated region
    $region30: #{tpu_custom_call.1} parent=1 // pred_check
      _
    $region31: #{tpu_custom_call.1} parent=1 // pred_check_branch
      %35 = sbr.rel (0) target = $region33
    $region32: #{tpu_custom_call.1} parent=1 // pred_region
      _
    $region33: #{tpu_custom_call.1} parent=1 // pred_fallthru
      _
    // Predicated region
    $region34: #{tpu_custom_call.1} parent=1 // pred_check
      _
    $region35: #{tpu_custom_call.1} parent=1 // pred_check_branch
      %37 = sbr.rel (0) target = $region37
    $region36: #{tpu_custom_call.1} parent=1 // pred_region
      _
    $region37: #{tpu_custom_call.1} parent=1 // pred_fallthru
      _
    // Predicated region
    $region38: #{tpu_custom_call.1} parent=1 // pred_check
      _
    $region39: #{tpu_custom_call.1} parent=1 // pred_check_branch
      %39 = sbr.rel (0) target = $region41
    $region40: #{tpu_custom_call.1} parent=1 // pred_region
      _
    $region41: #{tpu_custom_call.1} parent=1 // pred_fallthru
      _
    // Predicated region
    $region42: #{tpu_custom_call.1} parent=1 // pred_check
      _
    $region43: #{tpu_custom_call.1} parent=1 // pred_check_branch
      %41 = sbr.rel (0) target = $region45
    $region44: #{tpu_custom_call.1} parent=1 // pred_region
      _
    $region45: #{tpu_custom_call.1} parent=1 // pred_fallthru
      _
    // Predicated region
    $region46: #{tpu_custom_call.1} parent=1 // pred_check
      _
    $region47: #{tpu_custom_call.1} parent=1 // pred_check_branch
      %43 = sbr.rel (0) target = $region49
    $region48: #{tpu_custom_call.1} parent=1 // pred_region
      _
    $region49: #{tpu_custom_call.1} parent=1 // pred_fallthru
      _
    // Predicated region
    $region50: #{tpu_custom_call.1} parent=1 // pred_check
      _
    $region51: #{tpu_custom_call.1} parent=1 // pred_check_branch
      %45 = sbr.rel (0) target = $region53
    $region52: #{tpu_custom_call.1} parent=1 // pred_region
      _
    $region53: #{tpu_custom_call.1} parent=1 // pred_fallthru
      _
    // Predicated region
    $region54: #{tpu_custom_call.1} parent=1 // pred_check
      _
    $region55: #{tpu_custom_call.1} parent=1 // pred_check_branch
      %47 = sbr.rel (0) target = $region57
    $region56: #{tpu_custom_call.1} parent=1 // pred_region
      _
    $region57: #{tpu_custom_call.1} parent=1 // pred_fallthru
      _
    %v48 = vld [vmem:[%s0] sm:$0x3]
    %v49 = vld [vmem:[%s1] sm:$0xff]
    %v50 = vld [vmem:[%s1 + $0x8] sm:$0xff]
    %v51 = vld [vmem:[%s1 + $0x10] sm:$0xff]
    %v52 = vld [vmem:[%s1 + $0x18] sm:$0xff]
    %v53 = vld [vmem:[%s1 + $0x20] sm:$0xff]
    %v54 = vld [vmem:[%s1 + $0x28] sm:$0xff]
    %v55 = vld [vmem:[%s1 + $0x30] sm:$0xff]
    %v56 = vld [vmem:[%s1 + $0x38] sm:$0xff]
    %v57 = vld [vmem:[%s1 + $0x40] sm:$0xff]
    %v58 = vld [vmem:[%s1 + $0x48] sm:$0xff]
    %v59 = vld [vmem:[%s1 + $0x50] sm:$0xff]
    %v60 = vld [vmem:[%s1 + $0x58] sm:$0xff]
    %v61 = vld [vmem:[%s1 + $0x60] sm:$0xff]
    %v62 = vld [vmem:[%s1 + $0x68] sm:$0xff]
    %v63 = vld [vmem:[%s1 + $0x70] sm:$0xff]
    %v64 = vld [vmem:[%s1 + $0x78] sm:$0xff]
    %v65 = vld [vmem:[%s2] sm:$0xff]
    %v66 = vld [vmem:[%s2 + $0x8] sm:$0xff]
    %v67 = vld [vmem:[%s2 + $0x10] sm:$0xff]
    %v68 = vld [vmem:[%s2 + $0x18] sm:$0xff]
    %v69 = vld [vmem:[%s2 + $0x20] sm:$0xff]
    %v70 = vld [vmem:[%s2 + $0x28] sm:$0xff]
    %v71 = vld [vmem:[%s2 + $0x30] sm:$0xff]
    %v72 = vld [vmem:[%s2 + $0x38] sm:$0xff]
    %v73 = vld [vmem:[%s2 + $0x40] sm:$0xff]
    %v74 = vld [vmem:[%s2 + $0x48] sm:$0xff]
    %v75 = vld [vmem:[%s2 + $0x50] sm:$0xff]
    %v76 = vld [vmem:[%s2 + $0x58] sm:$0xff]
    %v77 = vld [vmem:[%s2 + $0x60] sm:$0xff]
    %v78 = vld [vmem:[%s2 + $0x68] sm:$0xff]
    %v79 = vld [vmem:[%s2 + $0x70] sm:$0xff]
    %v80 = vld [vmem:[%s2 + $0x78] sm:$0xff]
    %82 = vset.pattern.permute.xlu0 0
    %83 = vperm.xlu0 %82, %v65
    %v84 = vpop.permute.xlu0 %83
    %87 = vset.pattern.permute.xlu0 0
    %88 = vperm.xlu0 %87, %v66
    %v89 = vpop.permute.xlu0 %88
    %92 = vset.pattern.permute.xlu0 0
    %93 = vperm.xlu0 %92, %v67
    %v94 = vpop.permute.xlu0 %93
    %97 = vset.pattern.permute.xlu0 0
    %98 = vperm.xlu0 %97, %v68
    %v99 = vpop.permute.xlu0 %98
    %102 = vset.pattern.permute.xlu0 0
    %103 = vperm.xlu0 %102, %v69
    %v104 = vpop.permute.xlu0 %103
    %107 = vset.pattern.permute.xlu0 0
    %108 = vperm.xlu0 %107, %v70
    %v109 = vpop.permute.xlu0 %108
    %112 = vset.pattern.permute.xlu0 0
    %113 = vperm.xlu0 %112, %v71
    %v114 = vpop.permute.xlu0 %113
    %117 = vset.pattern.permute.xlu0 0
    %118 = vperm.xlu0 %117, %v72
    %v119 = vpop.permute.xlu0 %118
    %122 = vset.pattern.permute.xlu0 0
    %123 = vperm.xlu0 %122, %v73
    %v124 = vpop.permute.xlu0 %123
    %127 = vset.pattern.permute.xlu0 0
    %128 = vperm.xlu0 %127, %v74
    %v129 = vpop.permute.xlu0 %128
    %132 = vset.pattern.permute.xlu0 0
    %133 = vperm.xlu0 %132, %v75
    %v134 = vpop.permute.xlu0 %133
    %137 = vset.pattern.permute.xlu0 0
    %138 = vperm.xlu0 %137, %v76
    %v139 = vpop.permute.xlu0 %138
    %142 = vset.pattern.permute.xlu0 0
    %143 = vperm.xlu0 %142, %v77
    %v144 = vpop.permute.xlu0 %143
    %147 = vset.pattern.permute.xlu0 0
    %148 = vperm.xlu0 %147, %v78
    %v149 = vpop.permute.xlu0 %148
    %152 = vset.pattern.permute.xlu0 0
    %153 = vperm.xlu0 %152, %v79
    %v154 = vpop.permute.xlu0 %153
    %157 = vset.pattern.permute.xlu0 0
    %158 = vperm.xlu0 %157, %v80
    %v159 = vpop.permute.xlu0 %158
    %vm161 = vcmask 15360
    %v163 = vsel %vm161, %v49, 0
    %v166 = vsel %vm161, %v50, 0
    %v169 = vsel %vm161, %v51, 0
    %v172 = vsel %vm161, %v52, 0
    %v175 = vsel %vm161, %v53, 0
    %v178 = vsel %vm161, %v54, 0
    %v181 = vsel %vm161, %v55, 0
    %v184 = vsel %vm161, %v56, 0
    %v187 = vsel %vm161, %v57, 0
    %v190 = vsel %vm161, %v58, 0
    %v193 = vsel %vm161, %v59, 0
    %v196 = vsel %vm161, %v60, 0
    %v199 = vsel %vm161, %v61, 0
    %v202 = vsel %vm161, %v62, 0
    %v205 = vsel %vm161, %v63, 0
    %v208 = vsel %vm161, %v64, 0
    %vm210 = vcmask 1041408
    %v212 = vsel %vm210, %v48, 0
    %214 = vmatprep.subr.mxu0 0.0
    %215 = vmatpush1.msra.mxu0 %v212
    %216 = vmatprep.subr.mxu0 0.0
    %217 = vmatpush1.msra.mxu0 0.0
    %218 = vmatprep.subr.mxu0 0.0
    %219 = vmatpush1.msra.mxu0 0.0
    %220 = vmatprep.subr.mxu0 0.0
    %221 = vmatpush1.msra.mxu0 0.0
    %222 = vmatprep.subr.mxu0 0.0
    %223 = vmatpush1.msra.mxu0 0.0
    %224 = vmatprep.subr.mxu0 0.0
    %225 = vmatpush1.msra.mxu0 0.0
    %226 = vmatprep.subr.mxu0 0.0
    %227 = vmatpush1.msra.mxu0 0.0
    %228 = vmatprep.subr.mxu0 0.0
    %229 = vmatpush1.msra.mxu0 0.0
    %230 = vmatprep.subr.mxu0 0.0
    %231 = vmatpush1.msra.mxu0 0.0
    %232 = vmatprep.subr.mxu0 0.0
    %233 = vmatpush1.msra.mxu0 0.0
    %234 = vmatprep.subr.mxu0 0.0
    %235 = vmatpush1.msra.mxu0 0.0
    %236 = vmatprep.subr.mxu0 0.0
    %237 = vmatpush1.msra.mxu0 0.0
    %238 = vmatprep.subr.mxu0 0.0
    %239 = vmatpush1.msra.mxu0 0.0
    %240 = vmatprep.subr.mxu0 0.0
    %241 = vmatpush1.msra.mxu0 0.0
    %242 = vmatprep.subr.mxu0 0.0
    %243 = vmatpush1.msra.mxu0 0.0
    %244 = vmatprep.subr.mxu0 0.0
    %245 = vmatpush1.msra.mxu0 0.0
    %246 = vmatprep.subr.mxu0 0.0
    %247 = vmatpush1.msra.mxu0 0.0
    %248 = vmatprep.subr.mxu0 0.0
    %249 = vmatpush1.msra.mxu0 0.0
    %250 = vmatprep.subr.mxu0 0.0
    %251 = vmatpush1.msra.mxu0 0.0
    %252 = vmatprep.subr.mxu0 0.0
    %253 = vmatpush1.msra.mxu0 0.0
    %254 = vmatprep.subr.mxu0 0.0
    %255 = vmatpush1.msra.mxu0 0.0
    %256 = vmatprep.subr.mxu0 0.0
    %257 = vmatpush1.msra.mxu0 0.0
    %258 = vmatprep.subr.mxu0 0.0
    %259 = vmatpush1.msra.mxu0 0.0
    %260 = vmatprep.subr.mxu0 0.0
    %261 = vmatpush1.msra.mxu0 0.0
    %262 = vmatprep.subr.mxu0 0.0
    %263 = vmatpush1.msra.mxu0 0.0
    %264 = vmatprep.subr.mxu0 0.0
    %265 = vmatpush1.msra.mxu0 0.0
    %266 = vmatprep.subr.mxu0 0.0
    %267 = vmatpush1.msra.mxu0 0.0
    %268 = vmatprep.subr.mxu0 0.0
    %269 = vmatpush1.msra.mxu0 0.0
    %270 = vmatprep.subr.mxu0 0.0
    %271 = vmatpush1.msra.mxu0 0.0
    %272 = vmatprep.subr.mxu0 0.0
    %273 = vmatpush1.msra.mxu0 0.0
    %274 = vmatprep.subr.mxu0 0.0
    %275 = vmatpush1.msra.mxu0 0.0
    %276 = vmatprep.subr.mxu0 0.0
    %277 = vmatpush1.msra.mxu0 0.0
    %278 = vmatprep.mubr.f32.mxu0 0.0
    %279 = vmatmul.mubr.f32.gmra.mrb[0].mxu0 %v163
    %v280 = vpop.f32.mrb[0].mxu0
    %v281 = vadd.f32 %v84, %v280
    %v282 = vpop.f32.mrb[0].mxu0
    %283 = vmatprep.mubr.f32.mxu0 0.0
    %284 = vmatmul.mubr.f32.gmra.mrb[0].mxu0 %v166
    %v285 = vpop.f32.mrb[0].mxu0
    %v286 = vadd.f32 %v89, %v285
    %v287 = vpop.f32.mrb[0].mxu0
    %288 = vmatprep.mubr.f32.mxu0 0.0
    %289 = vmatmul.mubr.f32.gmra.mrb[0].mxu0 %v169
    %v290 = vpop.f32.mrb[0].mxu0
    %v291 = vadd.f32 %v94, %v290
    %v292 = vpop.f32.mrb[0].mxu0
    %293 = vmatprep.mubr.f32.mxu0 0.0
    %294 = vmatmul.mubr.f32.gmra.mrb[0].mxu0 %v172
    %v295 = vpop.f32.mrb[0].mxu0
    %v296 = vadd.f32 %v99, %v295
    %v297 = vpop.f32.mrb[0].mxu0
    %298 = vmatprep.mubr.f32.mxu0 0.0
    %299 = vmatmul.mubr.f32.gmra.mrb[0].mxu0 %v175
    %v300 = vpop.f32.mrb[0].mxu0
    %v301 = vadd.f32 %v104, %v300
    %v302 = vpop.f32.mrb[0].mxu0
    %303 = vmatprep.mubr.f32.mxu0 0.0
    %304 = vmatmul.mubr.f32.gmra.mrb[0].mxu0 %v178
    %v305 = vpop.f32.mrb[0].mxu0
    %v306 = vadd.f32 %v109, %v305
    %v307 = vpop.f32.mrb[0].mxu0
    %308 = vmatprep.mubr.f32.mxu0 0.0
    %309 = vmatmul.mubr.f32.gmra.mrb[0].mxu0 %v181
    %v310 = vpop.f32.mrb[0].mxu0
    %v311 = vadd.f32 %v114, %v310
    %v312 = vpop.f32.mrb[0].mxu0
    %313 = vmatprep.mubr.f32.mxu0 0.0
    %314 = vmatmul.mubr.f32.gmra.mrb[0].mxu0 %v184
    %v315 = vpop.f32.mrb[0].mxu0
    %v316 = vadd.f32 %v119, %v315
    %v317 = vpop.f32.mrb[0].mxu0
    %318 = vmatprep.mubr.f32.mxu0 0.0
    %319 = vmatmul.mubr.f32.gmra.mrb[0].mxu0 %v187
    %v320 = vpop.f32.mrb[0].mxu0
    %v321 = vadd.f32 %v124, %v320
    %v322 = vpop.f32.mrb[0].mxu0
    %323 = vmatprep.mubr.f32.mxu0 0.0
    %324 = vmatmul.mubr.f32.gmra.mrb[0].mxu0 %v190
    %v325 = vpop.f32.mrb[0].mxu0
    %v326 = vadd.f32 %v129, %v325
    %v327 = vpop.f32.mrb[0].mxu0
    %328 = vmatprep.mubr.f32.mxu0 0.0
    %329 = vmatmul.mubr.f32.gmra.mrb[0].mxu0 %v193
    %v330 = vpop.f32.mrb[0].mxu0
    %v331 = vadd.f32 %v134, %v330
    %v332 = vpop.f32.mrb[0].mxu0
    %333 = vmatprep.mubr.f32.mxu0 0.0
    %334 = vmatmul.mubr.f32.gmra.mrb[0].mxu0 %v196
    %v335 = vpop.f32.mrb[0].mxu0
    %v336 = vadd.f32 %v139, %v335
    %v337 = vpop.f32.mrb[0].mxu0
    %338 = vmatprep.mubr.f32.mxu0 0.0
    %339 = vmatmul.mubr.f32.gmra.mrb[0].mxu0 %v199
    %v340 = vpop.f32.mrb[0].mxu0
    %v341 = vadd.f32 %v144, %v340
    %v342 = vpop.f32.mrb[0].mxu0
    %343 = vmatprep.mubr.f32.mxu0 0.0
    %344 = vmatmul.mubr.f32.gmra.mrb[0].mxu0 %v202
    %v345 = vpop.f32.mrb[0].mxu0
    %v346 = vadd.f32 %v149, %v345
    %v347 = vpop.f32.mrb[0].mxu0
    %348 = vmatprep.mubr.f32.mxu0 0.0
    %349 = vmatmul.mubr.f32.gmra.mrb[0].mxu0 %v205
    %v350 = vpop.f32.mrb[0].mxu0
    %v351 = vadd.f32 %v154, %v350
    %v352 = vpop.f32.mrb[0].mxu0
    %353 = vmatprep.mubr.f32.mxu0 0.0
    %354 = vmatmul.mubr.f32.gmra.mrb[0].mxu0 %v208
    %v355 = vpop.f32.mrb[0].mxu0
    %v356 = vadd.f32 %v159, %v355
    %v357 = vpop.f32.mrb[0].mxu0
    %358 = vdwg.mxu0
    %v359 = vmax.f32 %v281, 0.0
    %v360 = vmax.f32 %v286, 0.0
    %v361 = vmax.f32 %v291, 0.0
    %v362 = vmax.f32 %v296, 0.0
    %v363 = vmax.f32 %v301, 0.0
    %v364 = vmax.f32 %v306, 0.0
    %v365 = vmax.f32 %v311, 0.0
    %v366 = vmax.f32 %v316, 0.0
    %v367 = vmax.f32 %v321, 0.0
    %v368 = vmax.f32 %v326, 0.0
    %v369 = vmax.f32 %v331, 0.0
    %v370 = vmax.f32 %v336, 0.0
    %v371 = vmax.f32 %v341, 0.0
    %v372 = vmax.f32 %v346, 0.0
    %v373 = vmax.f32 %v351, 0.0
    %v374 = vmax.f32 %v356, 0.0
    %v375 = vld [vmem:[%s3] sm:$0xff]
    %v376 = vld [vmem:[%s3 + $0x8] sm:$0xff]
    %v377 = vld [vmem:[%s3 + $0x10] sm:$0xff]
    %v378 = vld [vmem:[%s3 + $0x18] sm:$0xff]
    %v379 = vld [vmem:[%s3 + $0x20] sm:$0xff]
    %v380 = vld [vmem:[%s3 + $0x28] sm:$0xff]
    %v381 = vld [vmem:[%s3 + $0x30] sm:$0xff]
    %v382 = vld [vmem:[%s3 + $0x38] sm:$0xff]
    %v383 = vld [vmem:[%s4] sm:$0xff]
    %v384 = vld [vmem:[%s4 + $0x8] sm:$0xff]
    %v385 = vld [vmem:[%s4 + $0x10] sm:$0xff]
    %v386 = vld [vmem:[%s4 + $0x18] sm:$0xff]
    %v387 = vld [vmem:[%s4 + $0x20] sm:$0xff]
    %v388 = vld [vmem:[%s4 + $0x28] sm:$0xff]
    %v389 = vld [vmem:[%s4 + $0x30] sm:$0xff]
    %v390 = vld [vmem:[%s4 + $0x38] sm:$0xff]
    %392 = vset.pattern.permute.xlu0 0
    %393 = vperm.xlu0 %392, %v383
    %v394 = vpop.permute.xlu0 %393
    %397 = vset.pattern.permute.xlu0 0
    %398 = vperm.xlu0 %397, %v384
    %v399 = vpop.permute.xlu0 %398
    %402 = vset.pattern.permute.xlu0 0
    %403 = vperm.xlu0 %402, %v385
    %v404 = vpop.permute.xlu0 %403
    %407 = vset.pattern.permute.xlu0 0
    %408 = vperm.xlu0 %407, %v386
    %v409 = vpop.permute.xlu0 %408
    %412 = vset.pattern.permute.xlu0 0
    %413 = vperm.xlu0 %412, %v387
    %v414 = vpop.permute.xlu0 %413
    %417 = vset.pattern.permute.xlu0 0
    %418 = vperm.xlu0 %417, %v388
    %v419 = vpop.permute.xlu0 %418
    %422 = vset.pattern.permute.xlu0 0
    %423 = vperm.xlu0 %422, %v389
    %v424 = vpop.permute.xlu0 %423
    %427 = vset.pattern.permute.xlu0 0
    %428 = vperm.xlu0 %427, %v390
    %v429 = vpop.permute.xlu0 %428
    %431 = vmatprep.subr.mxu0 0.0
    %432 = vmatpush1.msra.mxu0 %v359
    %433 = vmatprep.subr.mxu0 0.0
    %434 = vmatpush1.msra.mxu0 %v360
    %435 = vmatprep.subr.mxu0 0.0
    %436 = vmatpush1.msra.mxu0 %v361
    %437 = vmatprep.subr.mxu0 0.0
    %438 = vmatpush1.msra.mxu0 %v362
    %439 = vmatprep.subr.mxu0 0.0
    %440 = vmatpush1.msra.mxu0 %v363
    %441 = vmatprep.subr.mxu0 0.0
    %442 = vmatpush1.msra.mxu0 %v364
    %443 = vmatprep.subr.mxu0 0.0
    %444 = vmatpush1.msra.mxu0 %v365
    %445 = vmatprep.subr.mxu0 0.0
    %446 = vmatpush1.msra.mxu0 %v366
    %447 = vmatprep.subr.mxu0 0.0
    %448 = vmatpush1.msra.mxu0 %v367
    %449 = vmatprep.subr.mxu0 0.0
    %450 = vmatpush1.msra.mxu0 %v368
    %451 = vmatprep.subr.mxu0 0.0
    %452 = vmatpush1.msra.mxu0 %v369
    %453 = vmatprep.subr.mxu0 0.0
    %454 = vmatpush1.msra.mxu0 %v370
    %455 = vmatprep.subr.mxu0 0.0
    %456 = vmatpush1.msra.mxu0 %v371
    %457 = vmatprep.subr.mxu0 0.0
    %458 = vmatpush1.msra.mxu0 %v372
    %459 = vmatprep.subr.mxu0 0.0
    %460 = vmatpush1.msra.mxu0 %v373
    %461 = vmatprep.subr.mxu0 0.0
    %462 = vmatpush1.msra.mxu0 %v374
    %463 = vmatprep.subr.mxu0 0.0
    %464 = vmatpush1.msra.mxu0 0.0
    %465 = vmatprep.subr.mxu0 0.0
    %466 = vmatpush1.msra.mxu0 0.0
    %467 = vmatprep.subr.mxu0 0.0
    %468 = vmatpush1.msra.mxu0 0.0
    %469 = vmatprep.subr.mxu0 0.0
    %470 = vmatpush1.msra.mxu0 0.0
    %471 = vmatprep.subr.mxu0 0.0
    %472 = vmatpush1.msra.mxu0 0.0
    %473 = vmatprep.subr.mxu0 0.0
    %474 = vmatpush1.msra.mxu0 0.0
    %475 = vmatprep.subr.mxu0 0.0
    %476 = vmatpush1.msra.mxu0 0.0
    %477 = vmatprep.subr.mxu0 0.0
    %478 = vmatpush1.msra.mxu0 0.0
    %479 = vmatprep.subr.mxu0 0.0
    %480 = vmatpush1.msra.mxu0 0.0
    %481 = vmatprep.subr.mxu0 0.0
    %482 = vmatpush1.msra.mxu0 0.0
    %483 = vmatprep.subr.mxu0 0.0
    %484 = vmatpush1.msra.mxu0 0.0
    %485 = vmatprep.subr.mxu0 0.0
    %486 = vmatpush1.msra.mxu0 0.0
    %487 = vmatprep.subr.mxu0 0.0
    %488 = vmatpush1.msra.mxu0 0.0
    %489 = vmatprep.subr.mxu0 0.0
    %490 = vmatpush1.msra.mxu0 0.0
    %491 = vmatprep.subr.mxu0 0.0
    %492 = vmatpush1.msra.mxu0 0.0
    %493 = vmatprep.subr.mxu0 0.0
    %494 = vmatpush1.msra.mxu0 0.0
    %495 = vmatprep.mubr.f32.mxu0 0.0
    %496 = vmatmul.mubr.f32.gmra.mrb[0].mxu0 %v375
    %v497 = vpop.f32.mrb[0].mxu0
    %v498 = vadd.f32 %v394, %v497
    %v499 = vpop.f32.mrb[0].mxu0
    %500 = vmatprep.mubr.f32.mxu0 0.0
    %501 = vmatmul.mubr.f32.gmra.mrb[0].mxu0 %v376
    %v502 = vpop.f32.mrb[0].mxu0
    %v503 = vadd.f32 %v399, %v502
    %v504 = vpop.f32.mrb[0].mxu0
    %505 = vmatprep.mubr.f32.mxu0 0.0
    %506 = vmatmul.mubr.f32.gmra.mrb[0].mxu0 %v377
    %v507 = vpop.f32.mrb[0].mxu0
    %v508 = vadd.f32 %v404, %v507
    %v509 = vpop.f32.mrb[0].mxu0
    %510 = vmatprep.mubr.f32.mxu0 0.0
    %511 = vmatmul.mubr.f32.gmra.mrb[0].mxu0 %v378
    %v512 = vpop.f32.mrb[0].mxu0
    %v513 = vadd.f32 %v409, %v512
    %v514 = vpop.f32.mrb[0].mxu0
    %515 = vmatprep.mubr.f32.mxu0 0.0
    %516 = vmatmul.mubr.f32.gmra.mrb[0].mxu0 %v379
    %v517 = vpop.f32.mrb[0].mxu0
    %v518 = vadd.f32 %v414, %v517
    %v519 = vpop.f32.mrb[0].mxu0
    %520 = vmatprep.mubr.f32.mxu0 0.0
    %521 = vmatmul.mubr.f32.gmra.mrb[0].mxu0 %v380
    %v522 = vpop.f32.mrb[0].mxu0
    %v523 = vadd.f32 %v419, %v522
    %v524 = vpop.f32.mrb[0].mxu0
    %525 = vmatprep.mubr.f32.mxu0 0.0
    %526 = vmatmul.mubr.f32.gmra.mrb[0].mxu0 %v381
    %v527 = vpop.f32.mrb[0].mxu0
    %v528 = vadd.f32 %v424, %v527
    %v529 = vpop.f32.mrb[0].mxu0
    %530 = vmatprep.mubr.f32.mxu0 0.0
    %531 = vmatmul.mubr.f32.gmra.mrb[0].mxu0 %v382
    %v532 = vpop.f32.mrb[0].mxu0
    %v533 = vadd.f32 %v429, %v532
    %v534 = vpop.f32.mrb[0].mxu0
    %535 = vdwg.mxu0
    %v536 = vmax.f32 %v498, 0.0
    %v537 = vmax.f32 %v503, 0.0
    %v538 = vmax.f32 %v508, 0.0
    %v539 = vmax.f32 %v513, 0.0
    %v540 = vmax.f32 %v518, 0.0
    %v541 = vmax.f32 %v523, 0.0
    %v542 = vmax.f32 %v528, 0.0
    %v543 = vmax.f32 %v533, 0.0
    %v544 = vld [vmem:[%s5] sm:$0xff]
    %v545 = vld [vmem:[%s5 + $0x8] sm:$0xff]
    %v546 = vld [vmem:[%s5 + $0x10] sm:$0xff]
    %v547 = vld [vmem:[%s5 + $0x18] sm:$0xff]
    %v548 = vld [vmem:[%s6] sm:$0xff]
    %v549 = vld [vmem:[%s6 + $0x8] sm:$0xff]
    %v550 = vld [vmem:[%s6 + $0x10] sm:$0xff]
    %v551 = vld [vmem:[%s6 + $0x18] sm:$0xff]
    %553 = vset.pattern.permute.xlu0 0
    %554 = vperm.xlu0 %553, %v548
    %v555 = vpop.permute.xlu0 %554
    %558 = vset.pattern.permute.xlu0 0
    %559 = vperm.xlu0 %558, %v549
    %v560 = vpop.permute.xlu0 %559
    %563 = vset.pattern.permute.xlu0 0
    %564 = vperm.xlu0 %563, %v550
    %v565 = vpop.permute.xlu0 %564
    %568 = vset.pattern.permute.xlu0 0
    %569 = vperm.xlu0 %568, %v551
    %v570 = vpop.permute.xlu0 %569
    %vm572 = vcmask 523264
    %v574 = vsel %vm572, %v544, 0
    %v577 = vsel %vm572, %v545, 0
    %v580 = vsel %vm572, %v546, 0
    %v583 = vsel %vm572, %v547, 0
    %585 = vmatprep.subr.mxu0 0.0
    %586 = vmatpush1.msra.mxu0 %v536
    %587 = vmatprep.subr.mxu0 0.0
    %588 = vmatpush1.msra.mxu0 %v537
    %589 = vmatprep.subr.mxu0 0.0
    %590 = vmatpush1.msra.mxu0 %v538
    %591 = vmatprep.subr.mxu0 0.0
    %592 = vmatpush1.msra.mxu0 %v539
    %593 = vmatprep.subr.mxu0 0.0
    %594 = vmatpush1.msra.mxu0 %v540
    %595 = vmatprep.subr.mxu0 0.0
    %596 = vmatpush1.msra.mxu0 %v541
    %597 = vmatprep.subr.mxu0 0.0
    %598 = vmatpush1.msra.mxu0 %v542
    %599 = vmatprep.subr.mxu0 0.0
    %600 = vmatpush1.msra.mxu0 %v543
    %601 = vmatprep.subr.mxu0 0.0
    %602 = vmatpush1.msra.mxu0 0.0
    %603 = vmatprep.subr.mxu0 0.0
    %604 = vmatpush1.msra.mxu0 0.0
    %605 = vmatprep.subr.mxu0 0.0
    %606 = vmatpush1.msra.mxu0 0.0
    %607 = vmatprep.subr.mxu0 0.0
    %608 = vmatpush1.msra.mxu0 0.0
    %609 = vmatprep.subr.mxu0 0.0
    %610 = vmatpush1.msra.mxu0 0.0
    %611 = vmatprep.subr.mxu0 0.0
    %612 = vmatpush1.msra.mxu0 0.0
    %613 = vmatprep.subr.mxu0 0.0
    %614 = vmatpush1.msra.mxu0 0.0
    %615 = vmatprep.subr.mxu0 0.0
    %616 = vmatpush1.msra.mxu0 0.0
    %617 = vmatprep.subr.mxu0 0.0
    %618 = vmatpush1.msra.mxu0 0.0
    %619 = vmatprep.subr.mxu0 0.0
    %620 = vmatpush1.msra.mxu0 0.0
    %621 = vmatprep.subr.mxu0 0.0
    %622 = vmatpush1.msra.mxu0 0.0
    %623 = vmatprep.subr.mxu0 0.0
    %624 = vmatpush1.msra.mxu0 0.0
    %625 = vmatprep.subr.mxu0 0.0
    %626 = vmatpush1.msra.mxu0 0.0
    %627 = vmatprep.subr.mxu0 0.0
    %628 = vmatpush1.msra.mxu0 0.0
    %629 = vmatprep.subr.mxu0 0.0
    %630 = vmatpush1.msra.mxu0 0.0
    %631 = vmatprep.subr.mxu0 0.0
    %632 = vmatpush1.msra.mxu0 0.0
    %633 = vmatprep.subr.mxu0 0.0
    %634 = vmatpush1.msra.mxu0 0.0
    %635 = vmatprep.subr.mxu0 0.0
    %636 = vmatpush1.msra.mxu0 0.0
    %637 = vmatprep.subr.mxu0 0.0
    %638 = vmatpush1.msra.mxu0 0.0
    %639 = vmatprep.subr.mxu0 0.0
    %640 = vmatpush1.msra.mxu0 0.0
    %641 = vmatprep.subr.mxu0 0.0
    %642 = vmatpush1.msra.mxu0 0.0
    %643 = vmatprep.subr.mxu0 0.0
    %644 = vmatpush1.msra.mxu0 0.0
    %645 = vmatprep.subr.mxu0 0.0
    %646 = vmatpush1.msra.mxu0 0.0
    %647 = vmatprep.subr.mxu0 0.0
    %648 = vmatpush1.msra.mxu0 0.0
    %649 = vmatprep.mubr.f32.mxu0 0.0
    %650 = vmatmul.mubr.f32.gmra.mrb[0].mxu0 %v574
    %v651 = vpop.f32.mrb[0].mxu0
    %v652 = vadd.f32 %v555, %v651
    %v653 = vpop.f32.mrb[0].mxu0
    %654 = vmatprep.mubr.f32.mxu0 0.0
    %655 = vmatmul.mubr.f32.gmra.mrb[0].mxu0 %v577
    %v656 = vpop.f32.mrb[0].mxu0
    %v657 = vadd.f32 %v560, %v656
    %v658 = vpop.f32.mrb[0].mxu0
    %659 = vmatprep.mubr.f32.mxu0 0.0
    %660 = vmatmul.mubr.f32.gmra.mrb[0].mxu0 %v580
    %v661 = vpop.f32.mrb[0].mxu0
    %v662 = vadd.f32 %v565, %v661
    %v663 = vpop.f32.mrb[0].mxu0
    %664 = vmatprep.mubr.f32.mxu0 0.0
    %665 = vmatmul.mubr.f32.gmra.mrb[0].mxu0 %v583
    %v666 = vpop.f32.mrb[0].mxu0
    %v667 = vadd.f32 %v570, %v666
    %v668 = vpop.f32.mrb[0].mxu0
    %669 = vdwg.mxu0
    %v670 = vmax.f32 %v652, 0.0
    %v671 = vmax.f32 %v657, 0.0
    %v672 = vmax.f32 %v662, 0.0
    %v673 = vmax.f32 %v667, 0.0
    %v674 = vld [vmem:[%s7] sm:$0xff]
    %v675 = vld [vmem:[%s7 + $0x8] sm:$0xff]
    %v676 = vld [vmem:[%s8] sm:$0xff]
    %v677 = vld [vmem:[%s8 + $0x8] sm:$0xff]
    %679 = vset.pattern.permute.xlu0 0
    %680 = vperm.xlu0 %679, %v676
    %v681 = vpop.permute.xlu0 %680
    %684 = vset.pattern.permute.xlu0 0
    %685 = vperm.xlu0 %684, %v677
    %v686 = vpop.permute.xlu0 %685
    %vm688 = vcmask 261120
    %v690 = vsel %vm688, %v674, 0
    %v693 = vsel %vm688, %v675, 0
    %695 = vmatprep.subr.mxu0 0.0
    %696 = vmatpush1.msra.mxu0 %v670
    %697 = vmatprep.subr.mxu0 0.0
    %698 = vmatpush1.msra.mxu0 %v671
    %699 = vmatprep.subr.mxu0 0.0
    %700 = vmatpush1.msra.mxu0 %v672
    %701 = vmatprep.subr.mxu0 0.0
    %702 = vmatpush1.msra.mxu0 %v673
    %703 = vmatprep.subr.mxu0 0.0
    %704 = vmatpush1.msra.mxu0 0.0
    %705 = vmatprep.subr.mxu0 0.0
    %706 = vmatpush1.msra.mxu0 0.0
    %707 = vmatprep.subr.mxu0 0.0
    %708 = vmatpush1.msra.mxu0 0.0
    %709 = vmatprep.subr.mxu0 0.0
    %710 = vmatpush1.msra.mxu0 0.0
    %711 = vmatprep.subr.mxu0 0.0
    %712 = vmatpush1.msra.mxu0 0.0
    %713 = vmatprep.subr.mxu0 0.0
    %714 = vmatpush1.msra.mxu0 0.0
    %715 = vmatprep.subr.mxu0 0.0
    %716 = vmatpush1.msra.mxu0 0.0
    %717 = vmatprep.subr.mxu0 0.0
    %718 = vmatpush1.msra.mxu0 0.0
    %719 = vmatprep.subr.mxu0 0.0
    %720 = vmatpush1.msra.mxu0 0.0
    %721 = vmatprep.subr.mxu0 0.0
    %722 = vmatpush1.msra.mxu0 0.0
    %723 = vmatprep.subr.mxu0 0.0
    %724 = vmatpush1.msra.mxu0 0.0
    %725 = vmatprep.subr.mxu0 0.0
    %726 = vmatpush1.msra.mxu0 0.0
    %727 = vmatprep.subr.mxu0 0.0
    %728 = vmatpush1.msra.mxu0 0.0
    %729 = vmatprep.subr.mxu0 0.0
    %730 = vmatpush1.msra.mxu0 0.0
    %731 = vmatprep.subr.mxu0 0.0
    %732 = vmatpush1.msra.mxu0 0.0
    %733 = vmatprep.subr.mxu0 0.0
    %734 = vmatpush1.msra.mxu0 0.0
    %735 = vmatprep.subr.mxu0 0.0
    %736 = vmatpush1.msra.mxu0 0.0
    %737 = vmatprep.subr.mxu0 0.0
    %738 = vmatpush1.msra.mxu0 0.0
    %739 = vmatprep.subr.mxu0 0.0
    %740 = vmatpush1.msra.mxu0 0.0
    %741 = vmatprep.subr.mxu0 0.0
    %742 = vmatpush1.msra.mxu0 0.0
    %743 = vmatprep.subr.mxu0 0.0
    %744 = vmatpush1.msra.mxu0 0.0
    %745 = vmatprep.subr.mxu0 0.0
    %746 = vmatpush1.msra.mxu0 0.0
    %747 = vmatprep.subr.mxu0 0.0
    %748 = vmatpush1.msra.mxu0 0.0
    %749 = vmatprep.subr.mxu0 0.0
    %750 = vmatpush1.msra.mxu0 0.0
    %751 = vmatprep.subr.mxu0 0.0
    %752 = vmatpush1.msra.mxu0 0.0
    %753 = vmatprep.subr.mxu0 0.0
    %754 = vmatpush1.msra.mxu0 0.0
    %755 = vmatprep.subr.mxu0 0.0
    %756 = vmatpush1.msra.mxu0 0.0
    %757 = vmatprep.subr.mxu0 0.0
    %758 = vmatpush1.msra.mxu0 0.0
    %759 = vmatprep.mubr.f32.mxu0 0.0
    %760 = vmatmul.mubr.f32.gmra.mrb[0].mxu0 %v690
    %v761 = vpop.f32.mrb[0].mxu0
    %v762 = vadd.f32 %v681, %v761
    %v763 = vpop.f32.mrb[0].mxu0
    %764 = vmatprep.mubr.f32.mxu0 0.0
    %765 = vmatmul.mubr.f32.gmra.mrb[0].mxu0 %v693
    %v766 = vpop.f32.mrb[0].mxu0
    %v767 = vadd.f32 %v686, %v766
    %v768 = vpop.f32.mrb[0].mxu0
    %769 = vdwg.mxu0
    %v770 = vmax.f32 %v762, 0.0
    %v771 = vmax.f32 %v767, 0.0
    %v772 = vld [vmem:[%s9] sm:$0xf]
    %v773 = vld [vmem:[%s10] sm:$0xf]
    %775 = vset.pattern.permute.xlu0 0
    %776 = vperm.xlu0 %775, %v773
    %v777 = vpop.permute.xlu0 %776
    %vm779 = vcmask 130048
    %v781 = vsel %vm779, %v772, 0
    %783 = vmatprep.subr.mxu0 0.0
    %784 = vmatpush1.msra.mxu0 %v770
    %785 = vmatprep.subr.mxu0 0.0
    %786 = vmatpush1.msra.mxu0 %v771
    %787 = vmatprep.subr.mxu0 0.0
    %788 = vmatpush1.msra.mxu0 0.0
    %789 = vmatprep.subr.mxu0 0.0
    %790 = vmatpush1.msra.mxu0 0.0
    %791 = vmatprep.subr.mxu0 0.0
    %792 = vmatpush1.msra.mxu0 0.0
    %793 = vmatprep.subr.mxu0 0.0
    %794 = vmatpush1.msra.mxu0 0.0
    %795 = vmatprep.subr.mxu0 0.0
    %796 = vmatpush1.msra.mxu0 0.0
    %797 = vmatprep.subr.mxu0 0.0
    %798 = vmatpush1.msra.mxu0 0.0
    %799 = vmatprep.subr.mxu0 0.0
    %800 = vmatpush1.msra.mxu0 0.0
    %801 = vmatprep.subr.mxu0 0.0
    %802 = vmatpush1.msra.mxu0 0.0
    %803 = vmatprep.subr.mxu0 0.0
    %804 = vmatpush1.msra.mxu0 0.0
    %805 = vmatprep.subr.mxu0 0.0
    %806 = vmatpush1.msra.mxu0 0.0
    %807 = vmatprep.subr.mxu0 0.0
    %808 = vmatpush1.msra.mxu0 0.0
    %809 = vmatprep.subr.mxu0 0.0
    %810 = vmatpush1.msra.mxu0 0.0
    %811 = vmatprep.subr.mxu0 0.0
    %812 = vmatpush1.msra.mxu0 0.0
    %813 = vmatprep.subr.mxu0 0.0
    %814 = vmatpush1.msra.mxu0 0.0
    %815 = vmatprep.subr.mxu0 0.0
    %816 = vmatpush1.msra.mxu0 0.0
    %817 = vmatprep.subr.mxu0 0.0
    %818 = vmatpush1.msra.mxu0 0.0
    %819 = vmatprep.subr.mxu0 0.0
    %820 = vmatpush1.msra.mxu0 0.0
    %821 = vmatprep.subr.mxu0 0.0
    %822 = vmatpush1.msra.mxu0 0.0
    %823 = vmatprep.subr.mxu0 0.0
    %824 = vmatpush1.msra.mxu0 0.0
    %825 = vmatprep.subr.mxu0 0.0
    %826 = vmatpush1.msra.mxu0 0.0
    %827 = vmatprep.subr.mxu0 0.0
    %828 = vmatpush1.msra.mxu0 0.0
    %829 = vmatprep.subr.mxu0 0.0
    %830 = vmatpush1.msra.mxu0 0.0
    %831 = vmatprep.subr.mxu0 0.0
    %832 = vmatpush1.msra.mxu0 0.0
    %833 = vmatprep.subr.mxu0 0.0
    %834 = vmatpush1.msra.mxu0 0.0
    %835 = vmatprep.subr.mxu0 0.0
    %836 = vmatpush1.msra.mxu0 0.0
    %837 = vmatprep.subr.mxu0 0.0
    %838 = vmatpush1.msra.mxu0 0.0
    %839 = vmatprep.subr.mxu0 0.0
    %840 = vmatpush1.msra.mxu0 0.0
    %841 = vmatprep.subr.mxu0 0.0
    %842 = vmatpush1.msra.mxu0 0.0
    %843 = vmatprep.subr.mxu0 0.0
    %844 = vmatpush1.msra.mxu0 0.0
    %845 = vmatprep.subr.mxu0 0.0
    %846 = vmatpush1.msra.mxu0 0.0
    %847 = vmatprep.mubr.f32.mxu0 0.0
    %848 = vmatmul.mubr.f32.gmra.mrb[0].mxu0 %v781
    %v849 = vpop.f32.mrb[0].mxu0
    %v850 = vadd.f32 %v777, %v849
    %v851 = vpop.f32.mrb[0].mxu0
    %852 = vdwg.mxu0
    %v853 = vld [vmem:[%s11] sm:$0xf]
    %v854 = vld [vmem:[%s12] sm:$0xf]
    %v855 = vxor.u32 %v850, 2147483648
    %v856 = vmul.f32 %v855, 1.442695
    %v857 = vpow.pop %v856
    %v858 = vadd.f32 %v857, 1.0
    %v859 = vrcp.pop %v858
    %v860 = vmul.f32 1.0, %v859
    %862 = vset.pattern.permute.xlu0 0
    %863 = vperm.xlu0 %862, %v854
    %v864 = vpop.permute.xlu0 %863
    %v866 = vmul.f32 %v864, %v860
    %868 = vset.pattern.permute.xlu0 0
    %869 = vperm.xlu0 %868, %v853
    %v870 = vpop.permute.xlu0 %869
    %v872 = vadd.f32 %v870, %v866
    %v873 = vld [vmem:[%s13] sm:$0xf]
    %875 = vset.pattern.permute.xlu0 0
    %876 = vperm.xlu0 %875, %v873
    %v877 = vpop.permute.xlu0 %876
    %v879 = vmul.f32 %v877, %v850
    %v880 = vadd.f32 %v872, %v879
    %881 = vst [vmem:[#allocation2] sm:$0xf] %v880
    // Predicated region
    $region58: #{tpu_custom_call.1} parent=1 // pred_check
      _
    $region59: #{tpu_custom_call.1} parent=1 // pred_check_branch
      %883 = sbr.rel (0) target = $region61
    $region60: #{tpu_custom_call.1} parent=1 // pred_region
      %s885 = ssub.s32 64, 64
      %886 = vsyncadd [#allocation3], %s885
      %s888 = sshll.u32 [#allocation2], 4
      %s889 = int_to_ptr.vmem [resolvable:$true] %s888
      %891 = dma.vmem_to_hbm [thread:$0]  %s889, 64, %s14, [#allocation3]
    $region61: #{tpu_custom_call.1} parent=1 // pred_fallthru
      _
    // Predicated region
    $region62: #{tpu_custom_call.1} parent=1 // pred_check
      _
    $region63: #{tpu_custom_call.1} parent=1 // pred_check_branch
      %893 = sbr.rel (0) target = $region65
    $region64: #{tpu_custom_call.1} parent=1 // pred_region
      %894 = dma.done [#allocation3], 64
    $region65: #{tpu_custom_call.1} parent=1 // pred_fallthru
      _
    %895 = vsyncpa [#allocation3], 1

</llo_original>
